<compile_context>
chip_gen: v7x
topology: tpu7x:2x2x1
jax: 0.10.0
libtpu: 0.0.40
codegen_flags: <defaults>
</compile_context>

<pallas_src>
import jax
import jax.numpy as jnp
import numpy as np
from jax.experimental import pallas as pl
from jax.experimental.pallas import tpu as pltpu


# ---------------------------------------------------------------------------
# Pallas kernel: tiled identity copy (the concrete "wrapped_module" here).
# ---------------------------------------------------------------------------
def _copy_kernel(x_ref, o_ref):
    o_ref[...] = x_ref[...]


_TARGET_TILE_BYTES = 2 * 1024 * 1024   # ~2 MiB/block: near HBM roofline,
                                       # VMEM-safe on v5e/v6e/v7x.
_VMEM_LIMIT_BYTES = 32 * 1024 * 1024   # raise scoped VMEM (v5e default 16 MiB)


def _pallas_identity_2d(x2d: jax.Array) -> jax.Array:
    """Buffer-aliased identity over a lane-dense (rows, lanes) slab."""
    rows, lanes = x2d.shape
    itemsize = jnp.dtype(x2d.dtype).itemsize
    # Rows per block targeting ~2 MiB; multiple of 8 (sublane), at least 8.
    tile_rows = max(8, (_TARGET_TILE_BYTES // (lanes * itemsize)) // 8 * 8)
    if tile_rows >= rows:
        tile_rows = rows                 # single block == full array dims
    grid = (pl.cdiv(rows, tile_rows),)   # tail block (if any) masked by Pallas
    return pl.pallas_call(
        _copy_kernel,
        out_shape=jax.ShapeDtypeStruct((rows, lanes), x2d.dtype),
        grid=grid,
        in_specs=[pl.BlockSpec((tile_rows, lanes), lambda i: (i, 0))],
        out_specs=pl.BlockSpec((tile_rows, lanes), lambda i: (i, 0)),
        input_output_aliases={0: 0},     # output reuses the input HBM buffer
        compiler_params=pltpu.CompilerParams(
            dimension_semantics=("parallel",),   # shards rows over v7x's 2 TCs
            vmem_limit_bytes=_VMEM_LIMIT_BYTES,
        ),
    )(x2d)


def _identity_impl(x: jax.Array) -> jax.Array:
    """Example wrapped module: y = x, hot path executed by the Pallas kernel."""
    orig_shape = x.shape
    n = x.size
    if n == 0:
        return x
    # Widest lane-dense slab layout that evenly divides the flat size.
    lanes = next((c for c in (1024, 512, 256, 128) if n % c == 0), None)
    if lanes is None:
        # TODO(synk): ragged flat sizes (n % 128 != 0) take a minimal pad path.
        lanes = 128
        pad = (-n) % lanes
        slab = jnp.reshape(jnp.pad(jnp.reshape(x, (n,)), (0, pad)), (-1, lanes))
        out_flat = jnp.reshape(_pallas_identity_2d(slab), (-1,))[:n]
        return jnp.reshape(out_flat, orig_shape)
    slab = jnp.reshape(x, (-1, lanes))
    return jnp.reshape(_pallas_identity_2d(slab), orig_shape)


# Donate `x` so input_output_aliases lets XLA reuse the input buffer outright.
pallas_identity_module = jax.jit(_identity_impl, donate_argnums=(0,))


# ---------------------------------------------------------------------------
# The wrapper itself (semantics of the PyTorch module).
# ---------------------------------------------------------------------------
class InputSignatureWrap:
    """JAX equivalent of the PyTorch InputSignatureWrap.

    Pins the forward signature to a single tensor `x` and forwards it to the
    wrapped module unchanged.
    """

    def __init__(self, wrapped_module):
        self.wrapped_module = wrapped_module

    def __call__(self, x: jax.Array) -> jax.Array:
        return self.wrapped_module(x)


if __name__ == "__main__":
    key = jax.random.PRNGKey(0)
    # NCHW, small: batch=2, channels=4, spatial=16x16.
    x = jax.random.normal(key, (2, 4, 16, 16), dtype=jnp.float32)
    x_host = np.asarray(x)               # host snapshot (x is donated below)

    model = InputSignatureWrap(pallas_identity_module)
    y = jax.block_until_ready(model(x))

    assert y.shape == x_host.shape and y.dtype == x_host.dtype
    assert np.array_equal(np.asarray(y), x_host)
    print("KERNEL_OK")
</pallas_src>

<mosaic_0001>
module attributes {stable_mosaic.version = 11 : i64} {
  func.func @_copy_kernel(%arg0: i32, %arg1: memref<2x1024xf32, #tpu.memory_space<vmem>>, %arg2: memref<2x1024xf32, #tpu.memory_space<vmem>>) attributes {dimension_semantics = [#tpu.dimension_semantics<parallel>], iteration_bounds = array<i64: 1>, scalar_prefetch = 0 : i64, scratch_operands = 0 : i64, tpu.core_type = #tpu.core_type<tc>, window_params = [{transform_indices = @transform_0, window_bounds = array<i64: 2, 1024>}, {transform_indices = @transform_1, window_bounds = array<i64: 2, 1024>}]} {
    %c0 = arith.constant 0 : index
    %c0_0 = arith.constant 0 : index
    %0 = vector.load %arg1[%c0, %c0_0] : memref<2x1024xf32, #tpu.memory_space<vmem>>, vector<2x1024xf32>
    %c0_1 = arith.constant 0 : index
    %c0_2 = arith.constant 0 : index
    %1 = vector.load %arg2[%c0_1, %c0_2] : memref<2x1024xf32, #tpu.memory_space<vmem>>, vector<2x1024xf32>
    tpu.vector_store %arg2[%c0_1, %c0_2], %0 {strides = array<i32>} : memref<2x1024xf32, #tpu.memory_space<vmem>>, vector<2x1024xf32>,
    return
  }
  func.func @transform_0(%arg0: i32) -> (i32, i32) {
    %c0_i32 = arith.constant 0 : i32
    %c0_i32_0 = arith.constant 0 : i32
    return %arg0, %c0_i32 : i32, i32
  }
  func.func @transform_1(%arg0: i32) -> (i32, i32) {
    %c0_i32 = arith.constant 0 : i32
    %c0_i32_0 = arith.constant 0 : i32
    return %arg0, %c0_i32 : i32, i32
  }
}

</mosaic_0001>

<llo_original>
// kernel: _identity_impl.1
$region0: #{_identity_impl.1}
  #allocation0 [shape = 'u32[]', space=smem, size = 0x4, offset = 0x4, fixed_abs, tag = 'smem constant byte address 0x4 - core index']
  #allocation1 [shape = 'u32[144,128]{1,0:T(1,128)}', space=vmem, size = 0x12000, scoped, tag = 'internal scratch']
  %s0 = inlined_call_operand.vmem [shape: f32[2,1024], index: 0, kind: input, shape index: {}, may-alias: {0,1}]
  %s1 = inlined_call_operand.vmem [shape: f32[2,1024], index: 1, kind: output, shape index: {}, may-alias: {0,1}]
  %s2 = sld [smem:[#allocation0]]
  $region14: #{_identity_impl.1} parent=0
    _
  %s4 = ssub.s32 1, %s2
  %s5 = scalar_select 0, %s4, %s2
  // Predicated region
  $region2: #{_identity_impl.1} parent=0 // pred_check
    _
  $region3: #{_identity_impl.1} parent=0 // pred_check_branch
    %7 = sbr.rel (0) target = $region5
  $region4: #{_identity_impl.1} parent=0 // pred_region
    _
  $region5: #{_identity_impl.1} parent=0 // pred_fallthru
    _
  %v8 = vld [vmem:[%s0] sm:$0xff]
  %v9 = vld [vmem:[%s0 + $0x8] sm:$0xff]
  %10 = vst [vmem:[%s1] sm:$0xff] %v8
  %11 = vst [vmem:[%s1 + $0x8] sm:$0xff] %v9
  // Predicated region
  $region6: #{_identity_impl.1} parent=0 // pred_check
    _
  $region7: #{_identity_impl.1} parent=0 // pred_check_branch
    %13 = sbr.rel (0) target = $region9
  $region8: #{_identity_impl.1} parent=0 // pred_region
    _
  $region9: #{_identity_impl.1} parent=0 // pred_fallthru
    _
  // Predicated region
  $region10: #{_identity_impl.1} parent=0 // pred_check
    _
  $region11: #{_identity_impl.1} parent=0 // pred_check_branch
    %15 = sbr.rel (0) target = $region13
  $region12: #{_identity_impl.1} parent=0 // pred_region
    _
  $region13: #{_identity_impl.1} parent=0 // pred_fallthru
    _

</llo_original>
